<compile_context>
chip_gen: v7x
topology: tpu7x:2x2x1
jax: 0.10.0
libtpu: 0.0.40
codegen_flags: <defaults>
</compile_context>

<pallas_src>
import functools

import jax
import jax.numpy as jnp
from jax import lax
from jax.experimental import pallas as pl
from jax.experimental.pallas import tpu as pltpu

INPUT_DIM = 8 * 8 * 3          # 192
HIDDEN_DIM = 8 * 8 * 3 * 4     # 768
OUTPUT_DIM = 8 * 8 * 3         # 192

_CHUNK = 256                   # rows per in-kernel sub-chunk


def _round_up(x, n):
    return ((x + n - 1) // n) * n


def _cdiv(a, b):
    return -(-a // b)


def _plan_tiles(m, tm_max):
    """Pick (row_tile, chunk). Small problems get a single grid step sized to the problem;
    large problems use tm_max (rounded to the chunk size) and prefer an even step count so
    v7x's two TensorCores get balanced work on the 'parallel' row axis."""
    m8 = _round_up(max(m, 1), 8)
    if m8 <= _CHUNK:
        return m8, m8                                   # one grid step, one chunk
    tm_cap = max(_CHUNK, _round_up(tm_max, _CHUNK))
    tm = min(_round_up(m8, _CHUNK), tm_cap)
    steps = _cdiv(m8, tm)
    if steps > 1 and steps % 2 == 1:
        tm_alt = _round_up(_cdiv(m8, steps + 1), _CHUNK)
        if tm_alt >= _CHUNK and _cdiv(m8, tm_alt) % 2 == 0:
            tm = tm_alt
    return tm, _CHUNK


def _gelu_erf(x):
    # PyTorch nn.GELU() default: exact erf formulation (f32).
    return 0.5 * x * (1.0 + lax.erf(x * 0.7071067811865476))


def _gelu_tanh(x):
    # tanh approximation: the transcendental runs on the EUP (its own VLIW slot), leaving
    # the VALU slot mostly free. Slightly different numerics vs the exact erf GELU.
    return 0.5 * x * (1.0 + jnp.tanh(0.7978845608028654 * (x + 0.044715 * x * x * x)))


def _mlp_kernel(x_ref, w1_ref, b1_ref, w2_ref, b2_ref, o_ref, h_ref, *, chunk, exact):
    gelu = _gelu_erf if exact else _gelu_tanh
    tm = x_ref.shape[0]
    n_chunks = tm // chunk          # static; tm is always a multiple of chunk
    n_slots = h_ref.shape[0]

    # Statically-unrolled chunk loop: matmul1 -> bias+GELU -> matmul2 -> store per chunk,
    # staged through a ping-pong VMEM scratch so chunk i+1's first matmul isn't serialized
    # behind chunk i's second matmul reading the same buffer.
    for c in range(n_chunks):
        r0 = c * chunk              # static slice start (sublane-aligned)
        slot = c % n_slots

        xb = x_ref[r0:r0 + chunk, :]
        if not exact:
            # Cast to bf16 on the VPU inside the kernel (x stays f32 in HBM; no extra pass).
            xb = xb.astype(jnp.bfloat16)

        h = jnp.dot(xb, w1_ref[...], preferred_element_type=jnp.float32)
        h = gelu(h + b1_ref[...])                       # bias + GELU in f32
        h_ref[slot] = h.astype(h_ref.dtype)             # stage hidden act (bf16 on fast path)

        y = jnp.dot(h_ref[slot], w2_ref[...], preferred_element_type=jnp.float32)
        o_ref[r0:r0 + chunk, :] = gelu(y + b2_ref[...]).astype(o_ref.dtype)


@functools.partial(jax.jit, static_argnames=("tm", "exact"))
def mlp_forward(x, w1, b1, w2, b2, *, tm=2048, exact=False):
    """x: (..., INPUT_DIM) -> (..., OUTPUT_DIM).

    exact=False (default): bf16 MXU operands + tanh GELU, f32 accumulation and f32
    bias+GELU (fast path). exact=True: f32 matmuls + exact erf GELU (PyTorch-parity path).
    """
    orig_shape = x.shape
    d_in = orig_shape[-1]
    x2d = x.reshape(-1, d_in)
    m = x2d.shape[0]
    d_hid = w1.shape[1]
    d_out = w2.shape[1]

    tm_eff, chunk = _plan_tiles(m, tm)
    n_slots = min(2, tm_eff // chunk)

    w_dtype = jnp.float32 if exact else jnp.bfloat16
    h_dtype = jnp.float32 if exact else jnp.bfloat16

    # Weights are tiny (192x768 / 768x192): pre-casting them is a one-time negligible cost.
    w1_in = w1.astype(w_dtype)
    w2_in = w2.astype(w_dtype)
    b1_2d = b1.reshape(1, d_hid).astype(jnp.float32)
    b2_2d = b2.reshape(1, d_out).astype(jnp.float32)

    kernel = functools.partial(_mlp_kernel, chunk=chunk, exact=exact)

    out2d = pl.pallas_call(
        kernel,
        out_shape=jax.ShapeDtypeStruct((m, d_out), x.dtype),
        grid_spec=pltpu.PrefetchScalarGridSpec(
            num_scalar_prefetch=0,
            grid=(pl.cdiv(m, tm_eff),),
            in_specs=[
                pl.BlockSpec((tm_eff, d_in), lambda i: (i, 0)),    # x row tile
                pl.BlockSpec((d_in, d_hid), lambda i: (0, 0)),     # W1 (resident)
                pl.BlockSpec((1, d_hid), lambda i: (0, 0)),        # b1 (resident)
                pl.BlockSpec((d_hid, d_out), lambda i: (0, 0)),    # W2 (resident)
                pl.BlockSpec((1, d_out), lambda i: (0, 0)),        # b2 (resident)
            ],
            # Natural (m, 192) output: last dim equals the full array dim, so no padding,
            # no post-kernel slice; the ragged last row-block's writeback is masked.
            out_specs=pl.BlockSpec((tm_eff, d_out), lambda i: (i, 0)),
            # Small ping-pong scratch for the per-chunk hidden activation.
            scratch_shapes=[pltpu.VMEM((n_slots, chunk, d_hid), h_dtype)],
        ),
        compiler_params=pltpu.CompilerParams(
            dimension_semantics=("parallel",),
            # ~8-12 MiB used at tm=2048; 48 MiB leaves sweep headroom and stays under
            # v7x's 64 MiB physical VMEM.
            vmem_limit_bytes=48 * 1024 * 1024,
        ),
    )(x2d, w1_in, b1_2d, w2_in, b2_2d)

    return out2d.reshape(*orig_shape[:-1], d_out)


def init_params(key):
    """Deterministic init mimicking nn.Linear defaults (uniform +-1/sqrt(fan_in))."""
    k1, k2, k3, k4 = jax.random.split(key, 4)
    lim1 = 1.0 / jnp.sqrt(INPUT_DIM)
    lim2 = 1.0 / jnp.sqrt(HIDDEN_DIM)
    # Stored as (in, out) so the kernel does x @ W.
    w1 = jax.random.uniform(k1, (INPUT_DIM, HIDDEN_DIM), jnp.float32, -lim1, lim1)
    b1 = jax.random.uniform(k2, (HIDDEN_DIM,), jnp.float32, -lim1, lim1)
    w2 = jax.random.uniform(k3, (HIDDEN_DIM, OUTPUT_DIM), jnp.float32, -lim2, lim2)
    b2 = jax.random.uniform(k4, (OUTPUT_DIM,), jnp.float32, -lim2, lim2)
    return w1, b1, w2, b2


if __name__ == "__main__":
    key = jax.random.PRNGKey(0)
    kx, kp = jax.random.split(key)
    w1, b1, w2, b2 = init_params(kp)

    def ref_mlp(x, approximate=False):
        h = jax.nn.gelu(x @ w1 + b1, approximate=approximate)
        return jax.nn.gelu(h @ w2 + b2, approximate=approximate)

    # Small ViT-like input (batch=2, seq=8, input_dim=192).
    x_small = jax.random.normal(kx, (2, 8, INPUT_DIM), dtype=jnp.float32)

    # Exact parity path (f32 matmuls + erf GELU) must match the reference tightly.
    out_exact = jax.block_until_ready(mlp_forward(x_small, w1, b1, w2, b2, exact=True))
    assert out_exact.shape == (2, 8, OUTPUT_DIM)
    assert jnp.allclose(out_exact, ref_mlp(x_small), atol=2e-5, rtol=2e-5)

    # Default fast path (bf16 MXU operands + tanh GELU, f32 accumulation): relaxed tolerance.
    out_fast = jax.block_until_ready(mlp_forward(x_small, w1, b1, w2, b2))
    assert out_fast.shape == (2, 8, OUTPUT_DIM)
    assert jnp.allclose(out_fast, ref_mlp(x_small, approximate=True), atol=3e-2, rtol=3e-2)

    # Larger, non-divisible row count (4 * 197 = 788 rows): exercises the ragged last block
    # (no wrapper pad / post-slice) and the multi-chunk in-kernel loop.
    x_big = jax.random.normal(kx, (4, 197, INPUT_DIM), dtype=jnp.float32)

    out_big_exact = jax.block_until_ready(mlp_forward(x_big, w1, b1, w2, b2, exact=True))
    assert out_big_exact.shape == (4, 197, OUTPUT_DIM)
    assert jnp.allclose(out_big_exact, ref_mlp(x_big), atol=2e-5, rtol=2e-5)

    out_big_fast = jax.block_until_ready(mlp_forward(x_big, w1, b1, w2, b2))
    assert out_big_fast.shape == (4, 197, OUTPUT_DIM)
    assert jnp.allclose(out_big_fast, ref_mlp(x_big, approximate=True), atol=3e-2, rtol=3e-2)

    print("KERNEL_OK")
</pallas_src>

<mosaic_0001>
module attributes {stable_mosaic.version = 11 : i64} {
  func.func @_mlp_kernel(%arg0: i32, %arg1: memref<16x192xf32, #tpu.memory_space<vmem>>, %arg2: memref<192x768xf32, #tpu.memory_space<vmem>>, %arg3: memref<1x768xf32, #tpu.memory_space<vmem>>, %arg4: memref<768x192xf32, #tpu.memory_space<vmem>>, %arg5: memref<1x192xf32, #tpu.memory_space<vmem>>, %arg6: memref<16x192xf32, #tpu.memory_space<vmem>>, %arg7: memref<1x16x768xf32, #tpu.memory_space<vmem>>) attributes {dimension_semantics = [#tpu.dimension_semantics<parallel>], iteration_bounds = array<i64: 1>, scalar_prefetch = 0 : i64, scratch_operands = 1 : i64, tpu.core_type = #tpu.core_type<tc>, window_params = [{transform_indices = @transform_0, window_bounds = array<i64: 16, 192>}, {pipeline_mode = #tpu.pipeline_mode<synchronous>, transform_indices = @transform_1, window_bounds = array<i64: 192, 768>}, {pipeline_mode = #tpu.pipeline_mode<synchronous>, transform_indices = @transform_2, window_bounds = array<i64: 1, 768>}, {pipeline_mode = #tpu.pipeline_mode<synchronous>, transform_indices = @transform_3, window_bounds = array<i64: 768, 192>}, {pipeline_mode = #tpu.pipeline_mode<synchronous>, transform_indices = @transform_4, window_bounds = array<i64: 1, 192>}, {transform_indices = @transform_5, window_bounds = array<i64: 16, 192>}]} {
    %c0 = arith.constant 0 : index
    %c0_0 = arith.constant 0 : index
    %0 = vector.load %arg1[%c0, %c0_0] : memref<16x192xf32, #tpu.memory_space<vmem>>, vector<16x192xf32>
    %c0_1 = arith.constant 0 : index
    %c0_2 = arith.constant 0 : index
    %1 = vector.load %arg2[%c0_1, %c0_2] : memref<192x768xf32, #tpu.memory_space<vmem>>, vector<192x768xf32>
    %cst = arith.constant dense<0.000000e+00> : vector<16x768xf32>
    %2 = tpu.matmul %0, %1, %cst {dimension_numbers = #tpu.dot_dimension_numbers<[1], [0], [0], [1], [0, 0, 1, 1], [], []>} : vector<16x192xf32>, vector<192x768xf32>, vector<16x768xf32> -> vector<16x768xf32>
    %c0_3 = arith.constant 0 : index
    %c0_4 = arith.constant 0 : index
    %3 = vector.load %arg3[%c0_3, %c0_4] : memref<1x768xf32, #tpu.memory_space<vmem>>, vector<1x768xf32>
    %4 = vector.broadcast %3 : vector<1x768xf32> to vector<16x768xf32>
    %5 = arith.addf %2, %4 : vector<16x768xf32>
    %cst_5 = arith.constant 5.000000e-01 : f32
    %6 = vector.broadcast %cst_5 : f32 to vector<16x768xf32>
    %7 = arith.mulf %6, %5 : vector<16x768xf32>
    %cst_6 = arith.constant 0.707106769 : f32
    %8 = vector.broadcast %cst_6 : f32 to vector<16x768xf32>
    %9 = arith.mulf %5, %8 : vector<16x768xf32>
    %10 = math.erf %9 : vector<16x768xf32>
    %cst_7 = arith.constant 1.000000e+00 : f32
    %11 = vector.broadcast %cst_7 : f32 to vector<16x768xf32>
    %12 = arith.addf %11, %10 : vector<16x768xf32>
    %13 = arith.mulf %7, %12 : vector<16x768xf32>
    %c0_8 = arith.constant 0 : index
    %c0_9 = arith.constant 0 : index
    %c0_10 = arith.constant 0 : index
    %14 = vector.load %arg7[%c0_8, %c0_9, %c0_10] : memref<1x16x768xf32, #tpu.memory_space<vmem>>, vector<1x16x768xf32>
    %15 = vector.shape_cast %14 : vector<1x16x768xf32> to vector<16x768xf32>
    %16 = vector.shape_cast %13 : vector<16x768xf32> to vector<1x16x768xf32>
    tpu.vector_store %arg7[%c0_8, %c0_9, %c0_10], %16 {strides = array<i32>} : memref<1x16x768xf32, #tpu.memory_space<vmem>>, vector<1x16x768xf32>,
    %c0_11 = arith.constant 0 : index
    %c0_12 = arith.constant 0 : index
    %c0_13 = arith.constant 0 : index
    %17 = vector.load %arg7[%c0_11, %c0_12, %c0_13] : memref<1x16x768xf32, #tpu.memory_space<vmem>>, vector<1x16x768xf32>
    %18 = vector.shape_cast %17 : vector<1x16x768xf32> to vector<16x768xf32>
    %c0_14 = arith.constant 0 : index
    %c0_15 = arith.constant 0 : index
    %19 = vector.load %arg4[%c0_14, %c0_15] : memref<768x192xf32, #tpu.memory_space<vmem>>, vector<768x192xf32>
    %cst_16 = arith.constant dense<0.000000e+00> : vector<16x192xf32>
    %20 = tpu.matmul %18, %19, %cst_16 {dimension_numbers = #tpu.dot_dimension_numbers<[1], [0], [0], [1], [0, 0, 1, 1], [], []>} : vector<16x768xf32>, vector<768x192xf32>, vector<16x192xf32> -> vector<16x192xf32>
    %c0_17 = arith.constant 0 : index
    %c0_18 = arith.constant 0 : index
    %21 = vector.load %arg5[%c0_17, %c0_18] : memref<1x192xf32, #tpu.memory_space<vmem>>, vector<1x192xf32>
    %22 = vector.broadcast %21 : vector<1x192xf32> to vector<16x192xf32>
    %23 = arith.addf %20, %22 : vector<16x192xf32>
    %cst_19 = arith.constant 5.000000e-01 : f32
    %24 = vector.broadcast %cst_19 : f32 to vector<16x192xf32>
    %25 = arith.mulf %24, %23 : vector<16x192xf32>
    %cst_20 = arith.constant 0.707106769 : f32
    %26 = vector.broadcast %cst_20 : f32 to vector<16x192xf32>
    %27 = arith.mulf %23, %26 : vector<16x192xf32>
    %28 = math.erf %27 : vector<16x192xf32>
    %cst_21 = arith.constant 1.000000e+00 : f32
    %29 = vector.broadcast %cst_21 : f32 to vector<16x192xf32>
    %30 = arith.addf %29, %28 : vector<16x192xf32>
    %31 = arith.mulf %25, %30 : vector<16x192xf32>
    %c0_22 = arith.constant 0 : index
    %c0_23 = arith.constant 0 : index
    %32 = vector.load %arg6[%c0_22, %c0_23] : memref<16x192xf32, #tpu.memory_space<vmem>>, vector<16x192xf32>
    tpu.vector_store %arg6[%c0_22, %c0_23], %31 {strides = array<i32>} : memref<16x192xf32, #tpu.memory_space<vmem>>, vector<16x192xf32>,
    return
  }
  func.func @transform_0(%arg0: i32) -> (i32, i32) {
    %c0_i32 = arith.constant 0 : i32
    %c0_i32_0 = arith.constant 0 : i32
    return %arg0, %c0_i32 : i32, i32
  }
  func.func @transform_1(%arg0: i32) -> (i32, i32) {
    %c0_i32 = arith.constant 0 : i32
    %c0_i32_0 = arith.constant 0 : i32
    %c0_i32_1 = arith.constant 0 : i32
    return %c0_i32, %c0_i32_0 : i32, i32
  }
  func.func @transform_2(%arg0: i32) -> (i32, i32) {
    %c0_i32 = arith.constant 0 : i32
    %c0_i32_0 = arith.constant 0 : i32
    %c0_i32_1 = arith.constant 0 : i32
    return %c0_i32, %c0_i32_0 : i32, i32
  }
  func.func @transform_3(%arg0: i32) -> (i32, i32) {
    %c0_i32 = arith.constant 0 : i32
    %c0_i32_0 = arith.constant 0 : i32
    %c0_i32_1 = arith.constant 0 : i32
    return %c0_i32, %c0_i32_0 : i32, i32
  }
  func.func @transform_4(%arg0: i32) -> (i32, i32) {
    %c0_i32 = arith.constant 0 : i32
    %c0_i32_0 = arith.constant 0 : i32
    %c0_i32_1 = arith.constant 0 : i32
    return %c0_i32, %c0_i32_0 : i32, i32
  }
  func.func @transform_5(%arg0: i32) -> (i32, i32) {
    %c0_i32 = arith.constant 0 : i32
    %c0_i32_0 = arith.constant 0 : i32
    return %arg0, %c0_i32 : i32, i32
  }
}

</mosaic_0001>

<llo_original>
// kernel: mlp_forward.1
$region0: #{mlp_forward.1}
  #allocation0 [shape = 'u32[]', space=smem, size = 0x4, offset = 0x4, fixed_abs, tag = 'smem constant byte address 0x4 - core index']
  #allocation1 [shape = 'u32[144,128]{1,0:T(1,128)}', space=vmem, size = 0x12000, scoped, tag = 'internal scratch']
  #allocation2 [shape = 'f32[1,16,768]{2,1,0:T(8,128)}', space=vmem, size = 0xc000, scoped, tag = 'scratch operand']
  %s0 = inlined_call_operand.vmem [shape: f32[16,192], index: 0, kind: input, shape index: {}]
  %s1 = inlined_call_operand.vmem [shape: f32[192,768], index: 1, kind: input, shape index: {}]
  %s2 = inlined_call_operand.vmem [shape: f32[1,768], index: 2, kind: input, shape index: {}]
  %s3 = inlined_call_operand.vmem [shape: f32[768,192], index: 3, kind: input, shape index: {}]
  %s4 = inlined_call_operand.vmem [shape: f32[1,192], index: 4, kind: input, shape index: {}]
  %s5 = inlined_call_operand.hbm [shape: f32[16,192], index: 5, kind: output, shape index: {}]
  %s6 = sld [smem:[#allocation0]]
  $region30: #{mlp_forward.1} parent=0
    _
  %s8 = ssub.s32 1, %s6
  %s9 = scalar_select 0, %s8, %s6
  $region1: #{mlp_forward.1} parent=0
    #allocation3 [shape = 'u8[16384]{0}', space=vmem, size = 0x4000, scoped, tag = 'output window, operand 0, single buffered']
    #allocation4 [shape = 's32[1]{0}', space=sflag, size = 0x4, scoped, tag = 'scoped memory for mlp_forward.1']
    %10 = vsyncpa [#allocation4], 0
    // Predicated region
    $region2: #{mlp_forward.1} parent=1 // pred_check
      _
    $region3: #{mlp_forward.1} parent=1 // pred_check_branch
      %12 = sbr.rel (0) target = $region5
    $region4: #{mlp_forward.1} parent=1 // pred_region
      _
    $region5: #{mlp_forward.1} parent=1 // pred_fallthru
      _
    // Predicated region
    $region6: #{mlp_forward.1} parent=1 // pred_check
      _
    $region7: #{mlp_forward.1} parent=1 // pred_check_branch
      %14 = sbr.rel (0) target = $region9
    $region8: #{mlp_forward.1} parent=1 // pred_region
      _
    $region9: #{mlp_forward.1} parent=1 // pred_fallthru
      _
    // Predicated region
    $region10: #{mlp_forward.1} parent=1 // pred_check
      _
    $region11: #{mlp_forward.1} parent=1 // pred_check_branch
      %16 = sbr.rel (0) target = $region13
    $region12: #{mlp_forward.1} parent=1 // pred_region
      _
    $region13: #{mlp_forward.1} parent=1 // pred_fallthru
      _
    // Predicated region
    $region14: #{mlp_forward.1} parent=1 // pred_check
      _
    $region15: #{mlp_forward.1} parent=1 // pred_check_branch
      %18 = sbr.rel (0) target = $region17
    $region16: #{mlp_forward.1} parent=1 // pred_region
      _
    $region17: #{mlp_forward.1} parent=1 // pred_fallthru
      _
    // Predicated region
    $region18: #{mlp_forward.1} parent=1 // pred_check
      _
    $region19: #{mlp_forward.1} parent=1 // pred_check_branch
      %20 = sbr.rel (0) target = $region21
    $region20: #{mlp_forward.1} parent=1 // pred_region
      _
    $region21: #{mlp_forward.1} parent=1 // pred_fallthru
      _
    %v21 = vld [vmem:[%s0] sm:$0xff]
    %v22 = vld [vmem:[%s0 + $0x8] sm:$0xff]
    %v23 = vld [vmem:[%s0 + $0x10] sm:$0xff]
    %v24 = vld [vmem:[%s0 + $0x18] sm:$0xff]
    %v25 = vld [vmem:[%s1] sm:$0xff]
    %v26 = vld [vmem:[%s1 + $0x8] sm:$0xff]
    %v27 = vld [vmem:[%s1 + $0x10] sm:$0xff]
    %v28 = vld [vmem:[%s1 + $0x18] sm:$0xff]
    %v29 = vld [vmem:[%s1 + $0x20] sm:$0xff]
    %v30 = vld [vmem:[%s1 + $0x28] sm:$0xff]
    %v31 = vld [vmem:[%s1 + $0x30] sm:$0xff]
    %v32 = vld [vmem:[%s1 + $0x38] sm:$0xff]
    %v33 = vld [vmem:[%s1 + $0x40] sm:$0xff]
    %v34 = vld [vmem:[%s1 + $0x48] sm:$0xff]
    %v35 = vld [vmem:[%s1 + $0x50] sm:$0xff]
    %v36 = vld [vmem:[%s1 + $0x58] sm:$0xff]
    %v37 = vld [vmem:[%s1 + $0x60] sm:$0xff]
    %v38 = vld [vmem:[%s1 + $0x68] sm:$0xff]
    %v39 = vld [vmem:[%s1 + $0x70] sm:$0xff]
    %v40 = vld [vmem:[%s1 + $0x78] sm:$0xff]
    %v41 = vld [vmem:[%s1 + $0x80] sm:$0xff]
    %v42 = vld [vmem:[%s1 + $0x88] sm:$0xff]
    %v43 = vld [vmem:[%s1 + $0x90] sm:$0xff]
    %v44 = vld [vmem:[%s1 + $0x98] sm:$0xff]
    %v45 = vld [vmem:[%s1 + $0xa0] sm:$0xff]
    %v46 = vld [vmem:[%s1 + $0xa8] sm:$0xff]
    %v47 = vld [vmem:[%s1 + $0xb0] sm:$0xff]
    %v48 = vld [vmem:[%s1 + $0xb8] sm:$0xff]
    %v49 = vld [vmem:[%s1 + $0xc0] sm:$0xff]
    %v50 = vld [vmem:[%s1 + $0xc8] sm:$0xff]
    %v51 = vld [vmem:[%s1 + $0xd0] sm:$0xff]
    %v52 = vld [vmem:[%s1 + $0xd8] sm:$0xff]
    %v53 = vld [vmem:[%s1 + $0xe0] sm:$0xff]
    %v54 = vld [vmem:[%s1 + $0xe8] sm:$0xff]
    %v55 = vld [vmem:[%s1 + $0xf0] sm:$0xff]
    %v56 = vld [vmem:[%s1 + $0xf8] sm:$0xff]
    %v57 = vld [vmem:[%s1 + $0x100] sm:$0xff]
    %v58 = vld [vmem:[%s1 + $0x108] sm:$0xff]
    %v59 = vld [vmem:[%s1 + $0x110] sm:$0xff]
    %v60 = vld [vmem:[%s1 + $0x118] sm:$0xff]
    %v61 = vld [vmem:[%s1 + $0x120] sm:$0xff]
    %v62 = vld [vmem:[%s1 + $0x128] sm:$0xff]
    %v63 = vld [vmem:[%s1 + $0x130] sm:$0xff]
    %v64 = vld [vmem:[%s1 + $0x138] sm:$0xff]
    %v65 = vld [vmem:[%s1 + $0x140] sm:$0xff]
    %v66 = vld [vmem:[%s1 + $0x148] sm:$0xff]
    %v67 = vld [vmem:[%s1 + $0x150] sm:$0xff]
    %v68 = vld [vmem:[%s1 + $0x158] sm:$0xff]
    %v69 = vld [vmem:[%s1 + $0x160] sm:$0xff]
    %v70 = vld [vmem:[%s1 + $0x168] sm:$0xff]
    %v71 = vld [vmem:[%s1 + $0x170] sm:$0xff]
    %v72 = vld [vmem:[%s1 + $0x178] sm:$0xff]
    %v73 = vld [vmem:[%s1 + $0x180] sm:$0xff]
    %v74 = vld [vmem:[%s1 + $0x188] sm:$0xff]
    %v75 = vld [vmem:[%s1 + $0x190] sm:$0xff]
    %v76 = vld [vmem:[%s1 + $0x198] sm:$0xff]
    %v77 = vld [vmem:[%s1 + $0x1a0] sm:$0xff]
    %v78 = vld [vmem:[%s1 + $0x1a8] sm:$0xff]
    %v79 = vld [vmem:[%s1 + $0x1b0] sm:$0xff]
    %v80 = vld [vmem:[%s1 + $0x1b8] sm:$0xff]
    %v81 = vld [vmem:[%s1 + $0x1c0] sm:$0xff]
    %v82 = vld [vmem:[%s1 + $0x1c8] sm:$0xff]
    %v83 = vld [vmem:[%s1 + $0x1d0] sm:$0xff]
    %v84 = vld [vmem:[%s1 + $0x1d8] sm:$0xff]
    %v85 = vld [vmem:[%s1 + $0x1e0] sm:$0xff]
    %v86 = vld [vmem:[%s1 + $0x1e8] sm:$0xff]
    %v87 = vld [vmem:[%s1 + $0x1f0] sm:$0xff]
    %v88 = vld [vmem:[%s1 + $0x1f8] sm:$0xff]
    %v89 = vld [vmem:[%s1 + $0x200] sm:$0xff]
    %v90 = vld [vmem:[%s1 + $0x208] sm:$0xff]
    %v91 = vld [vmem:[%s1 + $0x210] sm:$0xff]
    %v92 = vld [vmem:[%s1 + $0x218] sm:$0xff]
    %v93 = vld [vmem:[%s1 + $0x220] sm:$0xff]
    %v94 = vld [vmem:[%s1 + $0x228] sm:$0xff]
    %v95 = vld [vmem:[%s1 + $0x230] sm:$0xff]
    %v96 = vld [vmem:[%s1 + $0x238] sm:$0xff]
    %v97 = vld [vmem:[%s1 + $0x240] sm:$0xff]
    %v98 = vld [vmem:[%s1 + $0x248] sm:$0xff]
    %v99 = vld [vmem:[%s1 + $0x250] sm:$0xff]
    %v100 = vld [vmem:[%s1 + $0x258] sm:$0xff]
    %v101 = vld [vmem:[%s1 + $0x260] sm:$0xff]
    %v102 = vld [vmem:[%s1 + $0x268] sm:$0xff]
    %v103 = vld [vmem:[%s1 + $0x270] sm:$0xff]
    %v104 = vld [vmem:[%s1 + $0x278] sm:$0xff]
    %v105 = vld [vmem:[%s1 + $0x280] sm:$0xff]
    %v106 = vld [vmem:[%s1 + $0x288] sm:$0xff]
    %v107 = vld [vmem:[%s1 + $0x290] sm:$0xff]
    %v108 = vld [vmem:[%s1 + $0x298] sm:$0xff]
    %v109 = vld [vmem:[%s1 + $0x2a0] sm:$0xff]
    %v110 = vld [vmem:[%s1 + $0x2a8] sm:$0xff]
    %v111 = vld [vmem:[%s1 + $0x2b0] sm:$0xff]
    %v112 = vld [vmem:[%s1 + $0x2b8] sm:$0xff]
    %v113 = vld [vmem:[%s1 + $0x2c0] sm:$0xff]
    %v114 = vld [vmem:[%s1 + $0x2c8] sm:$0xff]
    %v115 = vld [vmem:[%s1 + $0x2d0] sm:$0xff]
    %v116 = vld [vmem:[%s1 + $0x2d8] sm:$0xff]
    %v117 = vld [vmem:[%s1 + $0x2e0] sm:$0xff]
    %v118 = vld [vmem:[%s1 + $0x2e8] sm:$0xff]
    %v119 = vld [vmem:[%s1 + $0x2f0] sm:$0xff]
    %v120 = vld [vmem:[%s1 + $0x2f8] sm:$0xff]
    %v121 = vld [vmem:[%s1 + $0x300] sm:$0xff]
    %v122 = vld [vmem:[%s1 + $0x308] sm:$0xff]
    %v123 = vld [vmem:[%s1 + $0x310] sm:$0xff]
    %v124 = vld [vmem:[%s1 + $0x318] sm:$0xff]
    %v125 = vld [vmem:[%s1 + $0x320] sm:$0xff]
    %v126 = vld [vmem:[%s1 + $0x328] sm:$0xff]
    %v127 = vld [vmem:[%s1 + $0x330] sm:$0xff]
    %v128 = vld [vmem:[%s1 + $0x338] sm:$0xff]
    %v129 = vld [vmem:[%s1 + $0x340] sm:$0xff]
    %v130 = vld [vmem:[%s1 + $0x348] sm:$0xff]
    %v131 = vld [vmem:[%s1 + $0x350] sm:$0xff]
    %v132 = vld [vmem:[%s1 + $0x358] sm:$0xff]
    %v133 = vld [vmem:[%s1 + $0x360] sm:$0xff]
    %v134 = vld [vmem:[%s1 + $0x368] sm:$0xff]
    %v135 = vld [vmem:[%s1 + $0x370] sm:$0xff]
    %v136 = vld [vmem:[%s1 + $0x378] sm:$0xff]
    %v137 = vld [vmem:[%s1 + $0x380] sm:$0xff]
    %v138 = vld [vmem:[%s1 + $0x388] sm:$0xff]
    %v139 = vld [vmem:[%s1 + $0x390] sm:$0xff]
    %v140 = vld [vmem:[%s1 + $0x398] sm:$0xff]
    %v141 = vld [vmem:[%s1 + $0x3a0] sm:$0xff]
    %v142 = vld [vmem:[%s1 + $0x3a8] sm:$0xff]
    %v143 = vld [vmem:[%s1 + $0x3b0] sm:$0xff]
    %v144 = vld [vmem:[%s1 + $0x3b8] sm:$0xff]
    %v145 = vld [vmem:[%s1 + $0x3c0] sm:$0xff]
    %v146 = vld [vmem:[%s1 + $0x3c8] sm:$0xff]
    %v147 = vld [vmem:[%s1 + $0x3d0] sm:$0xff]
    %v148 = vld [vmem:[%s1 + $0x3d8] sm:$0xff]
    %v149 = vld [vmem:[%s1 + $0x3e0] sm:$0xff]
    %v150 = vld [vmem:[%s1 + $0x3e8] sm:$0xff]
    %v151 = vld [vmem:[%s1 + $0x3f0] sm:$0xff]
    %v152 = vld [vmem:[%s1 + $0x3f8] sm:$0xff]
    %v153 = vld [vmem:[%s1 + $0x400] sm:$0xff]
    %v154 = vld [vmem:[%s1 + $0x408] sm:$0xff]
    %v155 = vld [vmem:[%s1 + $0x410] sm:$0xff]
    %v156 = vld [vmem:[%s1 + $0x418] sm:$0xff]
    %v157 = vld [vmem:[%s1 + $0x420] sm:$0xff]
    %v158 = vld [vmem:[%s1 + $0x428] sm:$0xff]
    %v159 = vld [vmem:[%s1 + $0x430] sm:$0xff]
    %v160 = vld [vmem:[%s1 + $0x438] sm:$0xff]
    %v161 = vld [vmem:[%s1 + $0x440] sm:$0xff]
    %v162 = vld [vmem:[%s1 + $0x448] sm:$0xff]
    %v163 = vld [vmem:[%s1 + $0x450] sm:$0xff]
    %v164 = vld [vmem:[%s1 + $0x458] sm:$0xff]
    %v165 = vld [vmem:[%s1 + $0x460] sm:$0xff]
    %v166 = vld [vmem:[%s1 + $0x468] sm:$0xff]
    %v167 = vld [vmem:[%s1 + $0x470] sm:$0xff]
    %v168 = vld [vmem:[%s1 + $0x478] sm:$0xff]
    %v169 = vld [vmem:[%s2] sm:$0x3f]
    %v171 = vlaneseq
    %v172 = vshrl.u32 %v171, 7
    %v173 = vsub.s32 0, %v172
    %v174 = vrot.slane %v169, %v173
    %v175 = vlaneseq
    %v176 = vshrl.u32 %v175, 7
    %v177 = vsub.s32 1, %v176
    %v178 = vrot.slane %v169, %v177
    %v179 = vlaneseq
    %v180 = vshrl.u32 %v179, 7
    %v181 = vsub.s32 2, %v180
    %v182 = vrot.slane %v169, %v181
    %v183 = vlaneseq
    %v184 = vshrl.u32 %v183, 7
    %v185 = vsub.s32 3, %v184
    %v186 = vrot.slane %v169, %v185
    %v187 = vlaneseq
    %v188 = vshrl.u32 %v187, 7
    %v189 = vsub.s32 4, %v188
    %v190 = vrot.slane %v169, %v189
    %v191 = vlaneseq
    %v192 = vshrl.u32 %v191, 7
    %v193 = vsub.s32 5, %v192
    %v194 = vrot.slane %v169, %v193
    %vm201 = vcmask 523264
    %v203 = vsel %vm201, %v22, 0
    %v206 = vsel %vm201, %v24, 0
    %208 = vmatprep.subr.mxu0 %v26
    %209 = vmatpush1.msra.mxu0 %v25
    %210 = vmatprep.subr.mxu0 %v32
    %211 = vmatpush1.msra.mxu0 %v31
    %212 = vmatprep.subr.mxu0 %v38
    %213 = vmatpush1.msra.mxu0 %v37
    %214 = vmatprep.subr.mxu0 %v44
    %215 = vmatpush1.msra.mxu0 %v43
    %216 = vmatprep.subr.mxu0 %v50
    %217 = vmatpush1.msra.mxu0 %v49
    %218 = vmatprep.subr.mxu0 %v56
    %219 = vmatpush1.msra.mxu0 %v55
    %220 = vmatprep.subr.mxu0 %v62
    %221 = vmatpush1.msra.mxu0 %v61
    %222 = vmatprep.subr.mxu0 %v68
    %223 = vmatpush1.msra.mxu0 %v67
    %224 = vmatprep.subr.mxu0 %v74
    %225 = vmatpush1.msra.mxu0 %v73
    %226 = vmatprep.subr.mxu0 %v80
    %227 = vmatpush1.msra.mxu0 %v79
    %228 = vmatprep.subr.mxu0 %v86
    %229 = vmatpush1.msra.mxu0 %v85
    %230 = vmatprep.subr.mxu0 %v92
    %231 = vmatpush1.msra.mxu0 %v91
    %232 = vmatprep.subr.mxu0 %v98
    %233 = vmatpush1.msra.mxu0 %v97
    %234 = vmatprep.subr.mxu0 %v104
    %235 = vmatpush1.msra.mxu0 %v103
    %236 = vmatprep.subr.mxu0 %v110
    %237 = vmatpush1.msra.mxu0 %v109
    %238 = vmatprep.subr.mxu0 %v116
    %239 = vmatpush1.msra.mxu0 %v115
    %240 = vmatprep.subr.mxu0 %v122
    %241 = vmatpush1.msra.mxu0 %v121
    %242 = vmatprep.subr.mxu0 %v128
    %243 = vmatpush1.msra.mxu0 %v127
    %244 = vmatprep.subr.mxu0 %v134
    %245 = vmatpush1.msra.mxu0 %v133
    %246 = vmatprep.subr.mxu0 %v140
    %247 = vmatpush1.msra.mxu0 %v139
    %248 = vmatprep.subr.mxu0 %v146
    %249 = vmatpush1.msra.mxu0 %v145
    %250 = vmatprep.subr.mxu0 %v152
    %251 = vmatpush1.msra.mxu0 %v151
    %252 = vmatprep.subr.mxu0 %v158
    %253 = vmatpush1.msra.mxu0 %v157
    %254 = vmatprep.subr.mxu0 %v164
    %255 = vmatpush1.msra.mxu0 %v163
    %256 = vmatprep.subr.mxu0 0.0
    %257 = vmatpush1.msra.mxu0 0.0
    %258 = vmatprep.subr.mxu0 0.0
    %259 = vmatpush1.msra.mxu0 0.0
    %260 = vmatprep.subr.mxu0 0.0
    %261 = vmatpush1.msra.mxu0 0.0
    %262 = vmatprep.subr.mxu0 0.0
    %263 = vmatpush1.msra.mxu0 0.0
    %264 = vmatprep.subr.mxu0 0.0
    %265 = vmatpush1.msra.mxu0 0.0
    %266 = vmatprep.subr.mxu0 0.0
    %267 = vmatpush1.msra.mxu0 0.0
    %268 = vmatprep.subr.mxu0 0.0
    %269 = vmatpush1.msra.mxu0 0.0
    %270 = vmatprep.subr.mxu0 0.0
    %271 = vmatpush1.msra.mxu0 0.0
    %272 = vmatprep.mubr.f32.mxu0 %v203
    %273 = vmatmul.mubr.f32.gmra.mrb[0].mxu0 %v21
    %v274 = vpop.f32.mrb[0].mxu0
    %v275 = vadd.f32 %v174, %v274
    %v276 = vpop.f32.mrb[0].mxu0
    %v277 = vadd.f32 %v178, %v276
    %278 = vmatprep.mubr.f32.mxu0 %v206
    %279 = vmatmul.mubr.f32.gmra.mrb[0].mxu0 %v23
    %v280 = vpop.f32.mrb[0].mxu0
    %v281 = vadd.f32 %v174, %v280
    %v282 = vpop.f32.mrb[0].mxu0
    %v283 = vadd.f32 %v178, %v282
    %284 = vdwg.mxu0
    %285 = vmatprep.subr.mxu0 %v28
    %286 = vmatpush1.msra.mxu0 %v27
    %287 = vmatprep.subr.mxu0 %v34
    %288 = vmatpush1.msra.mxu0 %v33
    %289 = vmatprep.subr.mxu0 %v40
    %290 = vmatpush1.msra.mxu0 %v39
    %291 = vmatprep.subr.mxu0 %v46
    %292 = vmatpush1.msra.mxu0 %v45
    %293 = vmatprep.subr.mxu0 %v52
    %294 = vmatpush1.msra.mxu0 %v51
    %295 = vmatprep.subr.mxu0 %v58
    %296 = vmatpush1.msra.mxu0 %v57
    %297 = vmatprep.subr.mxu0 %v64
    %298 = vmatpush1.msra.mxu0 %v63
    %299 = vmatprep.subr.mxu0 %v70
    %300 = vmatpush1.msra.mxu0 %v69
    %301 = vmatprep.subr.mxu0 %v76
    %302 = vmatpush1.msra.mxu0 %v75
    %303 = vmatprep.subr.mxu0 %v82
    %304 = vmatpush1.msra.mxu0 %v81
    %305 = vmatprep.subr.mxu0 %v88
    %306 = vmatpush1.msra.mxu0 %v87
    %307 = vmatprep.subr.mxu0 %v94
    %308 = vmatpush1.msra.mxu0 %v93
    %309 = vmatprep.subr.mxu0 %v100
    %310 = vmatpush1.msra.mxu0 %v99
    %311 = vmatprep.subr.mxu0 %v106
    %312 = vmatpush1.msra.mxu0 %v105
    %313 = vmatprep.subr.mxu0 %v112
    %314 = vmatpush1.msra.mxu0 %v111
    %315 = vmatprep.subr.mxu0 %v118
    %316 = vmatpush1.msra.mxu0 %v117
    %317 = vmatprep.subr.mxu0 %v124
    %318 = vmatpush1.msra.mxu0 %v123
    %319 = vmatprep.subr.mxu0 %v130
    %320 = vmatpush1.msra.mxu0 %v129
    %321 = vmatprep.subr.mxu0 %v136
    %322 = vmatpush1.msra.mxu0 %v135
    %323 = vmatprep.subr.mxu0 %v142
    %324 = vmatpush1.msra.mxu0 %v141
    %325 = vmatprep.subr.mxu0 %v148
    %326 = vmatpush1.msra.mxu0 %v147
    %327 = vmatprep.subr.mxu0 %v154
    %328 = vmatpush1.msra.mxu0 %v153
    %329 = vmatprep.subr.mxu0 %v160
    %330 = vmatpush1.msra.mxu0 %v159
    %331 = vmatprep.subr.mxu0 %v166
    %332 = vmatpush1.msra.mxu0 %v165
    %333 = vmatprep.subr.mxu0 0.0
    %334 = vmatpush1.msra.mxu0 0.0
    %335 = vmatprep.subr.mxu0 0.0
    %336 = vmatpush1.msra.mxu0 0.0
    %337 = vmatprep.subr.mxu0 0.0
    %338 = vmatpush1.msra.mxu0 0.0
    %339 = vmatprep.subr.mxu0 0.0
    %340 = vmatpush1.msra.mxu0 0.0
    %341 = vmatprep.subr.mxu0 0.0
    %342 = vmatpush1.msra.mxu0 0.0
    %343 = vmatprep.subr.mxu0 0.0
    %344 = vmatpush1.msra.mxu0 0.0
    %345 = vmatprep.subr.mxu0 0.0
    %346 = vmatpush1.msra.mxu0 0.0
    %347 = vmatprep.subr.mxu0 0.0
    %348 = vmatpush1.msra.mxu0 0.0
    %349 = vmatprep.mubr.f32.mxu0 %v203
    %350 = vmatmul.mubr.f32.gmra.mrb[0].mxu0 %v21
    %v351 = vpop.f32.mrb[0].mxu0
    %v352 = vadd.f32 %v182, %v351
    %v353 = vpop.f32.mrb[0].mxu0
    %v354 = vadd.f32 %v186, %v353
    %355 = vmatprep.mubr.f32.mxu0 %v206
    %356 = vmatmul.mubr.f32.gmra.mrb[0].mxu0 %v23
    %v357 = vpop.f32.mrb[0].mxu0
    %v358 = vadd.f32 %v182, %v357
    %v359 = vpop.f32.mrb[0].mxu0
    %v360 = vadd.f32 %v186, %v359
    %361 = vdwg.mxu0
    %362 = vmatprep.subr.mxu0 %v30
    %363 = vmatpush1.msra.mxu0 %v29
    %364 = vmatprep.subr.mxu0 %v36
    %365 = vmatpush1.msra.mxu0 %v35
    %366 = vmatprep.subr.mxu0 %v42
    %367 = vmatpush1.msra.mxu0 %v41
    %368 = vmatprep.subr.mxu0 %v48
    %369 = vmatpush1.msra.mxu0 %v47
    %370 = vmatprep.subr.mxu0 %v54
    %371 = vmatpush1.msra.mxu0 %v53
    %372 = vmatprep.subr.mxu0 %v60
    %373 = vmatpush1.msra.mxu0 %v59
    %374 = vmatprep.subr.mxu0 %v66
    %375 = vmatpush1.msra.mxu0 %v65
    %376 = vmatprep.subr.mxu0 %v72
    %377 = vmatpush1.msra.mxu0 %v71
    %378 = vmatprep.subr.mxu0 %v78
    %379 = vmatpush1.msra.mxu0 %v77
    %380 = vmatprep.subr.mxu0 %v84
    %381 = vmatpush1.msra.mxu0 %v83
    %382 = vmatprep.subr.mxu0 %v90
    %383 = vmatpush1.msra.mxu0 %v89
    %384 = vmatprep.subr.mxu0 %v96
    %385 = vmatpush1.msra.mxu0 %v95
    %386 = vmatprep.subr.mxu0 %v102
    %387 = vmatpush1.msra.mxu0 %v101
    %388 = vmatprep.subr.mxu0 %v108
    %389 = vmatpush1.msra.mxu0 %v107
    %390 = vmatprep.subr.mxu0 %v114
    %391 = vmatpush1.msra.mxu0 %v113
    %392 = vmatprep.subr.mxu0 %v120
    %393 = vmatpush1.msra.mxu0 %v119
    %394 = vmatprep.subr.mxu0 %v126
    %395 = vmatpush1.msra.mxu0 %v125
    %396 = vmatprep.subr.mxu0 %v132
    %397 = vmatpush1.msra.mxu0 %v131
    %398 = vmatprep.subr.mxu0 %v138
    %399 = vmatpush1.msra.mxu0 %v137
    %400 = vmatprep.subr.mxu0 %v144
    %401 = vmatpush1.msra.mxu0 %v143
    %402 = vmatprep.subr.mxu0 %v150
    %403 = vmatpush1.msra.mxu0 %v149
    %404 = vmatprep.subr.mxu0 %v156
    %405 = vmatpush1.msra.mxu0 %v155
    %406 = vmatprep.subr.mxu0 %v162
    %407 = vmatpush1.msra.mxu0 %v161
    %408 = vmatprep.subr.mxu0 %v168
    %409 = vmatpush1.msra.mxu0 %v167
    %410 = vmatprep.subr.mxu0 0.0
    %411 = vmatpush1.msra.mxu0 0.0
    %412 = vmatprep.subr.mxu0 0.0
    %413 = vmatpush1.msra.mxu0 0.0
    %414 = vmatprep.subr.mxu0 0.0
    %415 = vmatpush1.msra.mxu0 0.0
    %416 = vmatprep.subr.mxu0 0.0
    %417 = vmatpush1.msra.mxu0 0.0
    %418 = vmatprep.subr.mxu0 0.0
    %419 = vmatpush1.msra.mxu0 0.0
    %420 = vmatprep.subr.mxu0 0.0
    %421 = vmatpush1.msra.mxu0 0.0
    %422 = vmatprep.subr.mxu0 0.0
    %423 = vmatpush1.msra.mxu0 0.0
    %424 = vmatprep.subr.mxu0 0.0
    %425 = vmatpush1.msra.mxu0 0.0
    %426 = vmatprep.mubr.f32.mxu0 %v203
    %427 = vmatmul.mubr.f32.gmra.mrb[0].mxu0 %v21
    %v428 = vpop.f32.mrb[0].mxu0
    %v429 = vadd.f32 %v190, %v428
    %v430 = vpop.f32.mrb[0].mxu0
    %v431 = vadd.f32 %v194, %v430
    %432 = vmatprep.mubr.f32.mxu0 %v206
    %433 = vmatmul.mubr.f32.gmra.mrb[0].mxu0 %v23
    %v434 = vpop.f32.mrb[0].mxu0
    %v435 = vadd.f32 %v190, %v434
    %v436 = vpop.f32.mrb[0].mxu0
    %v437 = vadd.f32 %v194, %v436
    %438 = vdwg.mxu0
    %v439 = vmul.f32 %v275, 0.5
    %v440 = vmul.f32 %v277, 0.5
    %v441 = vmul.f32 %v352, 0.5
    %v442 = vmul.f32 %v354, 0.5
    %v443 = vmul.f32 %v429, 0.5
    %v444 = vmul.f32 %v431, 0.5
    %v445 = vmul.f32 %v281, 0.5
    %v446 = vmul.f32 %v283, 0.5
    %v447 = vmul.f32 %v358, 0.5
    %v448 = vmul.f32 %v360, 0.5
    %v449 = vmul.f32 %v435, 0.5
    %v450 = vmul.f32 %v437, 0.5
    %v451 = vmul.f32 %v275, 0.70710677
    %v452 = vmul.f32 %v277, 0.70710677
    %v453 = vmul.f32 %v352, 0.70710677
    %v454 = vmul.f32 %v354, 0.70710677
    %v455 = vmul.f32 %v429, 0.70710677
    %v456 = vmul.f32 %v431, 0.70710677
    %v457 = vmul.f32 %v281, 0.70710677
    %v458 = vmul.f32 %v283, 0.70710677
    %v459 = vmul.f32 %v358, 0.70710677
    %v460 = vmul.f32 %v360, 0.70710677
    %v461 = vmul.f32 %v435, 0.70710677
    %v462 = vmul.f32 %v437, 0.70710677
    %v463 = verf.f32.pop %v451
    %v464 = verf.f32.pop %v452
    %v465 = verf.f32.pop %v453
    %v466 = verf.f32.pop %v454
    %v467 = verf.f32.pop %v455
    %v468 = verf.f32.pop %v456
    %v469 = verf.f32.pop %v457
    %v470 = verf.f32.pop %v458
    %v471 = verf.f32.pop %v459
    %v472 = verf.f32.pop %v460
    %v473 = verf.f32.pop %v461
    %v474 = verf.f32.pop %v462
    %v475 = vadd.f32 %v463, 1.0
    %v476 = vadd.f32 %v464, 1.0
    %v477 = vadd.f32 %v465, 1.0
    %v478 = vadd.f32 %v466, 1.0
    %v479 = vadd.f32 %v467, 1.0
    %v480 = vadd.f32 %v468, 1.0
    %v481 = vadd.f32 %v469, 1.0
    %v482 = vadd.f32 %v470, 1.0
    %v483 = vadd.f32 %v471, 1.0
    %v484 = vadd.f32 %v472, 1.0
    %v485 = vadd.f32 %v473, 1.0
    %v486 = vadd.f32 %v474, 1.0
    %v487 = vmul.f32 %v439, %v475
    %v488 = vmul.f32 %v440, %v476
    %v489 = vmul.f32 %v441, %v477
    %v490 = vmul.f32 %v442, %v478
    %v491 = vmul.f32 %v443, %v479
    %v492 = vmul.f32 %v444, %v480
    %v493 = vmul.f32 %v445, %v481
    %v494 = vmul.f32 %v446, %v482
    %v495 = vmul.f32 %v447, %v483
    %v496 = vmul.f32 %v448, %v484
    %v497 = vmul.f32 %v449, %v485
    %v498 = vmul.f32 %v450, %v486
    %499 = vst [vmem:[#allocation2] sm:$0xff] %v487
    %500 = vst [vmem:[#allocation2 + $0x8] sm:$0xff] %v488
    %501 = vst [vmem:[#allocation2 + $0x10] sm:$0xff] %v489
    %502 = vst [vmem:[#allocation2 + $0x18] sm:$0xff] %v490
    %503 = vst [vmem:[#allocation2 + $0x20] sm:$0xff] %v491
    %504 = vst [vmem:[#allocation2 + $0x28] sm:$0xff] %v492
    %505 = vst [vmem:[#allocation2 + $0x30] sm:$0xff] %v493
    %506 = vst [vmem:[#allocation2 + $0x38] sm:$0xff] %v494
    %507 = vst [vmem:[#allocation2 + $0x40] sm:$0xff] %v495
    %508 = vst [vmem:[#allocation2 + $0x48] sm:$0xff] %v496
    %509 = vst [vmem:[#allocation2 + $0x50] sm:$0xff] %v497
    %510 = vst [vmem:[#allocation2 + $0x58] sm:$0xff] %v498
    %v511 = vld [vmem:[#allocation2] sm:$0xff]
    %v512 = vld [vmem:[#allocation2 + $0x8] sm:$0xff]
    %v513 = vld [vmem:[#allocation2 + $0x10] sm:$0xff]
    %v514 = vld [vmem:[#allocation2 + $0x18] sm:$0xff]
    %v515 = vld [vmem:[#allocation2 + $0x20] sm:$0xff]
    %v516 = vld [vmem:[#allocation2 + $0x28] sm:$0xff]
    %v517 = vld [vmem:[#allocation2 + $0x30] sm:$0xff]
    %v518 = vld [vmem:[#allocation2 + $0x38] sm:$0xff]
    %v519 = vld [vmem:[#allocation2 + $0x40] sm:$0xff]
    %v520 = vld [vmem:[#allocation2 + $0x48] sm:$0xff]
    %v521 = vld [vmem:[#allocation2 + $0x50] sm:$0xff]
    %v522 = vld [vmem:[#allocation2 + $0x58] sm:$0xff]
    %v523 = vld [vmem:[%s3] sm:$0xff]
    %v524 = vld [vmem:[%s3 + $0x8] sm:$0xff]
    %v525 = vld [vmem:[%s3 + $0x10] sm:$0xff]
    %v526 = vld [vmem:[%s3 + $0x18] sm:$0xff]
    %v527 = vld [vmem:[%s3 + $0x20] sm:$0xff]
    %v528 = vld [vmem:[%s3 + $0x28] sm:$0xff]
    %v529 = vld [vmem:[%s3 + $0x30] sm:$0xff]
    %v530 = vld [vmem:[%s3 + $0x38] sm:$0xff]
    %v531 = vld [vmem:[%s3 + $0x40] sm:$0xff]
    %v532 = vld [vmem:[%s3 + $0x48] sm:$0xff]
    %v533 = vld [vmem:[%s3 + $0x50] sm:$0xff]
    %v534 = vld [vmem:[%s3 + $0x58] sm:$0xff]
    %v535 = vld [vmem:[%s3 + $0x60] sm:$0xff]
    %v536 = vld [vmem:[%s3 + $0x68] sm:$0xff]
    %v537 = vld [vmem:[%s3 + $0x70] sm:$0xff]
    %v538 = vld [vmem:[%s3 + $0x78] sm:$0xff]
    %v539 = vld [vmem:[%s3 + $0x80] sm:$0xff]
    %v540 = vld [vmem:[%s3 + $0x88] sm:$0xff]
    %v541 = vld [vmem:[%s3 + $0x90] sm:$0xff]
    %v542 = vld [vmem:[%s3 + $0x98] sm:$0xff]
    %v543 = vld [vmem:[%s3 + $0xa0] sm:$0xff]
    %v544 = vld [vmem:[%s3 + $0xa8] sm:$0xff]
    %v545 = vld [vmem:[%s3 + $0xb0] sm:$0xff]
    %v546 = vld [vmem:[%s3 + $0xb8] sm:$0xff]
    %v547 = vld [vmem:[%s3 + $0xc0] sm:$0xff]
    %v548 = vld [vmem:[%s3 + $0xc8] sm:$0xff]
    %v549 = vld [vmem:[%s3 + $0xd0] sm:$0xff]
    %v550 = vld [vmem:[%s3 + $0xd8] sm:$0xff]
    %v551 = vld [vmem:[%s3 + $0xe0] sm:$0xff]
    %v552 = vld [vmem:[%s3 + $0xe8] sm:$0xff]
    %v553 = vld [vmem:[%s3 + $0xf0] sm:$0xff]
    %v554 = vld [vmem:[%s3 + $0xf8] sm:$0xff]
    %v555 = vld [vmem:[%s3 + $0x100] sm:$0xff]
    %v556 = vld [vmem:[%s3 + $0x108] sm:$0xff]
    %v557 = vld [vmem:[%s3 + $0x110] sm:$0xff]
    %v558 = vld [vmem:[%s3 + $0x118] sm:$0xff]
    %v559 = vld [vmem:[%s3 + $0x120] sm:$0xff]
    %v560 = vld [vmem:[%s3 + $0x128] sm:$0xff]
    %v561 = vld [vmem:[%s3 + $0x130] sm:$0xff]
    %v562 = vld [vmem:[%s3 + $0x138] sm:$0xff]
    %v563 = vld [vmem:[%s3 + $0x140] sm:$0xff]
    %v564 = vld [vmem:[%s3 + $0x148] sm:$0xff]
    %v565 = vld [vmem:[%s3 + $0x150] sm:$0xff]
    %v566 = vld [vmem:[%s3 + $0x158] sm:$0xff]
    %v567 = vld [vmem:[%s3 + $0x160] sm:$0xff]
    %v568 = vld [vmem:[%s3 + $0x168] sm:$0xff]
    %v569 = vld [vmem:[%s3 + $0x170] sm:$0xff]
    %v570 = vld [vmem:[%s3 + $0x178] sm:$0xff]
    %v571 = vld [vmem:[%s3 + $0x180] sm:$0xff]
    %v572 = vld [vmem:[%s3 + $0x188] sm:$0xff]
    %v573 = vld [vmem:[%s3 + $0x190] sm:$0xff]
    %v574 = vld [vmem:[%s3 + $0x198] sm:$0xff]
    %v575 = vld [vmem:[%s3 + $0x1a0] sm:$0xff]
    %v576 = vld [vmem:[%s3 + $0x1a8] sm:$0xff]
    %v577 = vld [vmem:[%s3 + $0x1b0] sm:$0xff]
    %v578 = vld [vmem:[%s3 + $0x1b8] sm:$0xff]
    %v579 = vld [vmem:[%s3 + $0x1c0] sm:$0xff]
    %v580 = vld [vmem:[%s3 + $0x1c8] sm:$0xff]
    %v581 = vld [vmem:[%s3 + $0x1d0] sm:$0xff]
    %v582 = vld [vmem:[%s3 + $0x1d8] sm:$0xff]
    %v583 = vld [vmem:[%s3 + $0x1e0] sm:$0xff]
    %v584 = vld [vmem:[%s3 + $0x1e8] sm:$0xff]
    %v585 = vld [vmem:[%s3 + $0x1f0] sm:$0xff]
    %v586 = vld [vmem:[%s3 + $0x1f8] sm:$0xff]
    %v587 = vld [vmem:[%s3 + $0x200] sm:$0xff]
    %v588 = vld [vmem:[%s3 + $0x208] sm:$0xff]
    %v589 = vld [vmem:[%s3 + $0x210] sm:$0xff]
    %v590 = vld [vmem:[%s3 + $0x218] sm:$0xff]
    %v591 = vld [vmem:[%s3 + $0x220] sm:$0xff]
    %v592 = vld [vmem:[%s3 + $0x228] sm:$0xff]
    %v593 = vld [vmem:[%s3 + $0x230] sm:$0xff]
    %v594 = vld [vmem:[%s3 + $0x238] sm:$0xff]
    %v595 = vld [vmem:[%s3 + $0x240] sm:$0xff]
    %v596 = vld [vmem:[%s3 + $0x248] sm:$0xff]
    %v597 = vld [vmem:[%s3 + $0x250] sm:$0xff]
    %v598 = vld [vmem:[%s3 + $0x258] sm:$0xff]
    %v599 = vld [vmem:[%s3 + $0x260] sm:$0xff]
    %v600 = vld [vmem:[%s3 + $0x268] sm:$0xff]
    %v601 = vld [vmem:[%s3 + $0x270] sm:$0xff]
    %v602 = vld [vmem:[%s3 + $0x278] sm:$0xff]
    %v603 = vld [vmem:[%s3 + $0x280] sm:$0xff]
    %v604 = vld [vmem:[%s3 + $0x288] sm:$0xff]
    %v605 = vld [vmem:[%s3 + $0x290] sm:$0xff]
    %v606 = vld [vmem:[%s3 + $0x298] sm:$0xff]
    %v607 = vld [vmem:[%s3 + $0x2a0] sm:$0xff]
    %v608 = vld [vmem:[%s3 + $0x2a8] sm:$0xff]
    %v609 = vld [vmem:[%s3 + $0x2b0] sm:$0xff]
    %v610 = vld [vmem:[%s3 + $0x2b8] sm:$0xff]
    %v611 = vld [vmem:[%s3 + $0x2c0] sm:$0xff]
    %v612 = vld [vmem:[%s3 + $0x2c8] sm:$0xff]
    %v613 = vld [vmem:[%s3 + $0x2d0] sm:$0xff]
    %v614 = vld [vmem:[%s3 + $0x2d8] sm:$0xff]
    %v615 = vld [vmem:[%s3 + $0x2e0] sm:$0xff]
    %v616 = vld [vmem:[%s3 + $0x2e8] sm:$0xff]
    %v617 = vld [vmem:[%s3 + $0x2f0] sm:$0xff]
    %v618 = vld [vmem:[%s3 + $0x2f8] sm:$0xff]
    %v619 = vld [vmem:[%s3 + $0x300] sm:$0xff]
    %v620 = vld [vmem:[%s3 + $0x308] sm:$0xff]
    %v621 = vld [vmem:[%s3 + $0x310] sm:$0xff]
    %v622 = vld [vmem:[%s3 + $0x318] sm:$0xff]
    %v623 = vld [vmem:[%s3 + $0x320] sm:$0xff]
    %v624 = vld [vmem:[%s3 + $0x328] sm:$0xff]
    %v625 = vld [vmem:[%s3 + $0x330] sm:$0xff]
    %v626 = vld [vmem:[%s3 + $0x338] sm:$0xff]
    %v627 = vld [vmem:[%s3 + $0x340] sm:$0xff]
    %v628 = vld [vmem:[%s3 + $0x348] sm:$0xff]
    %v629 = vld [vmem:[%s3 + $0x350] sm:$0xff]
    %v630 = vld [vmem:[%s3 + $0x358] sm:$0xff]
    %v631 = vld [vmem:[%s3 + $0x360] sm:$0xff]
    %v632 = vld [vmem:[%s3 + $0x368] sm:$0xff]
    %v633 = vld [vmem:[%s3 + $0x370] sm:$0xff]
    %v634 = vld [vmem:[%s3 + $0x378] sm:$0xff]
    %v635 = vld [vmem:[%s3 + $0x380] sm:$0xff]
    %v636 = vld [vmem:[%s3 + $0x388] sm:$0xff]
    %v637 = vld [vmem:[%s3 + $0x390] sm:$0xff]
    %v638 = vld [vmem:[%s3 + $0x398] sm:$0xff]
    %v639 = vld [vmem:[%s3 + $0x3a0] sm:$0xff]
    %v640 = vld [vmem:[%s3 + $0x3a8] sm:$0xff]
    %v641 = vld [vmem:[%s3 + $0x3b0] sm:$0xff]
    %v642 = vld [vmem:[%s3 + $0x3b8] sm:$0xff]
    %v643 = vld [vmem:[%s3 + $0x3c0] sm:$0xff]
    %v644 = vld [vmem:[%s3 + $0x3c8] sm:$0xff]
    %v645 = vld [vmem:[%s3 + $0x3d0] sm:$0xff]
    %v646 = vld [vmem:[%s3 + $0x3d8] sm:$0xff]
    %v647 = vld [vmem:[%s3 + $0x3e0] sm:$0xff]
    %v648 = vld [vmem:[%s3 + $0x3e8] sm:$0xff]
    %v649 = vld [vmem:[%s3 + $0x3f0] sm:$0xff]
    %v650 = vld [vmem:[%s3 + $0x3f8] sm:$0xff]
    %v651 = vld [vmem:[%s3 + $0x400] sm:$0xff]
    %v652 = vld [vmem:[%s3 + $0x408] sm:$0xff]
    %v653 = vld [vmem:[%s3 + $0x410] sm:$0xff]
    %v654 = vld [vmem:[%s3 + $0x418] sm:$0xff]
    %v655 = vld [vmem:[%s3 + $0x420] sm:$0xff]
    %v656 = vld [vmem:[%s3 + $0x428] sm:$0xff]
    %v657 = vld [vmem:[%s3 + $0x430] sm:$0xff]
    %v658 = vld [vmem:[%s3 + $0x438] sm:$0xff]
    %v659 = vld [vmem:[%s3 + $0x440] sm:$0xff]
    %v660 = vld [vmem:[%s3 + $0x448] sm:$0xff]
    %v661 = vld [vmem:[%s3 + $0x450] sm:$0xff]
    %v662 = vld [vmem:[%s3 + $0x458] sm:$0xff]
    %v663 = vld [vmem:[%s3 + $0x460] sm:$0xff]
    %v664 = vld [vmem:[%s3 + $0x468] sm:$0xff]
    %v665 = vld [vmem:[%s3 + $0x470] sm:$0xff]
    %v666 = vld [vmem:[%s3 + $0x478] sm:$0xff]
    %v667 = vld [vmem:[%s3 + $0x480] sm:$0xff]
    %v668 = vld [vmem:[%s3 + $0x488] sm:$0xff]
    %v669 = vld [vmem:[%s3 + $0x490] sm:$0xff]
    %v670 = vld [vmem:[%s3 + $0x498] sm:$0xff]
    %v671 = vld [vmem:[%s3 + $0x4a0] sm:$0xff]
    %v672 = vld [vmem:[%s3 + $0x4a8] sm:$0xff]
    %v673 = vld [vmem:[%s3 + $0x4b0] sm:$0xff]
    %v674 = vld [vmem:[%s3 + $0x4b8] sm:$0xff]
    %v675 = vld [vmem:[%s3 + $0x4c0] sm:$0xff]
    %v676 = vld [vmem:[%s3 + $0x4c8] sm:$0xff]
    %v677 = vld [vmem:[%s3 + $0x4d0] sm:$0xff]
    %v678 = vld [vmem:[%s3 + $0x4d8] sm:$0xff]
    %v679 = vld [vmem:[%s3 + $0x4e0] sm:$0xff]
    %v680 = vld [vmem:[%s3 + $0x4e8] sm:$0xff]
    %v681 = vld [vmem:[%s3 + $0x4f0] sm:$0xff]
    %v682 = vld [vmem:[%s3 + $0x4f8] sm:$0xff]
    %v683 = vld [vmem:[%s3 + $0x500] sm:$0xff]
    %v684 = vld [vmem:[%s3 + $0x508] sm:$0xff]
    %v685 = vld [vmem:[%s3 + $0x510] sm:$0xff]
    %v686 = vld [vmem:[%s3 + $0x518] sm:$0xff]
    %v687 = vld [vmem:[%s3 + $0x520] sm:$0xff]
    %v688 = vld [vmem:[%s3 + $0x528] sm:$0xff]
    %v689 = vld [vmem:[%s3 + $0x530] sm:$0xff]
    %v690 = vld [vmem:[%s3 + $0x538] sm:$0xff]
    %v691 = vld [vmem:[%s3 + $0x540] sm:$0xff]
    %v692 = vld [vmem:[%s3 + $0x548] sm:$0xff]
    %v693 = vld [vmem:[%s3 + $0x550] sm:$0xff]
    %v694 = vld [vmem:[%s3 + $0x558] sm:$0xff]
    %v695 = vld [vmem:[%s3 + $0x560] sm:$0xff]
    %v696 = vld [vmem:[%s3 + $0x568] sm:$0xff]
    %v697 = vld [vmem:[%s3 + $0x570] sm:$0xff]
    %v698 = vld [vmem:[%s3 + $0x578] sm:$0xff]
    %v699 = vld [vmem:[%s3 + $0x580] sm:$0xff]
    %v700 = vld [vmem:[%s3 + $0x588] sm:$0xff]
    %v701 = vld [vmem:[%s3 + $0x590] sm:$0xff]
    %v702 = vld [vmem:[%s3 + $0x598] sm:$0xff]
    %v703 = vld [vmem:[%s3 + $0x5a0] sm:$0xff]
    %v704 = vld [vmem:[%s3 + $0x5a8] sm:$0xff]
    %v705 = vld [vmem:[%s3 + $0x5b0] sm:$0xff]
    %v706 = vld [vmem:[%s3 + $0x5b8] sm:$0xff]
    %v707 = vld [vmem:[%s3 + $0x5c0] sm:$0xff]
    %v708 = vld [vmem:[%s3 + $0x5c8] sm:$0xff]
    %v709 = vld [vmem:[%s3 + $0x5d0] sm:$0xff]
    %v710 = vld [vmem:[%s3 + $0x5d8] sm:$0xff]
    %v711 = vld [vmem:[%s3 + $0x5e0] sm:$0xff]
    %v712 = vld [vmem:[%s3 + $0x5e8] sm:$0xff]
    %v713 = vld [vmem:[%s3 + $0x5f0] sm:$0xff]
    %v714 = vld [vmem:[%s3 + $0x5f8] sm:$0xff]
    %v715 = vld [vmem:[%s4] sm:$0x3]
    %v717 = vlaneseq
    %v718 = vshrl.u32 %v717, 7
    %v719 = vsub.s32 0, %v718
    %v720 = vrot.slane %v715, %v719
    %v721 = vlaneseq
    %v722 = vshrl.u32 %v721, 7
    %v723 = vsub.s32 1, %v722
    %v724 = vrot.slane %v715, %v723
    %727 = vmatprep.subr.mxu0 %v524
    %728 = vmatpush1.msra.mxu0 %v523
    %729 = vmatprep.subr.mxu0 %v526
    %730 = vmatpush1.msra.mxu0 %v525
    %731 = vmatprep.subr.mxu0 %v528
    %732 = vmatpush1.msra.mxu0 %v527
    %733 = vmatprep.subr.mxu0 %v530
    %734 = vmatpush1.msra.mxu0 %v529
    %735 = vmatprep.subr.mxu0 %v532
    %736 = vmatpush1.msra.mxu0 %v531
    %737 = vmatprep.subr.mxu0 %v534
    %738 = vmatpush1.msra.mxu0 %v533
    %739 = vmatprep.subr.mxu0 %v536
    %740 = vmatpush1.msra.mxu0 %v535
    %741 = vmatprep.subr.mxu0 %v538
    %742 = vmatpush1.msra.mxu0 %v537
    %743 = vmatprep.subr.mxu0 %v540
    %744 = vmatpush1.msra.mxu0 %v539
    %745 = vmatprep.subr.mxu0 %v542
    %746 = vmatpush1.msra.mxu0 %v541
    %747 = vmatprep.subr.mxu0 %v544
    %748 = vmatpush1.msra.mxu0 %v543
    %749 = vmatprep.subr.mxu0 %v546
    %750 = vmatpush1.msra.mxu0 %v545
    %751 = vmatprep.subr.mxu0 %v548
    %752 = vmatpush1.msra.mxu0 %v547
    %753 = vmatprep.subr.mxu0 %v550
    %754 = vmatpush1.msra.mxu0 %v549
    %755 = vmatprep.subr.mxu0 %v552
    %756 = vmatpush1.msra.mxu0 %v551
    %757 = vmatprep.subr.mxu0 %v554
    %758 = vmatpush1.msra.mxu0 %v553
    %759 = vmatprep.subr.mxu0 %v556
    %760 = vmatpush1.msra.mxu0 %v555
    %761 = vmatprep.subr.mxu0 %v558
    %762 = vmatpush1.msra.mxu0 %v557
    %763 = vmatprep.subr.mxu0 %v560
    %764 = vmatpush1.msra.mxu0 %v559
    %765 = vmatprep.subr.mxu0 %v562
    %766 = vmatpush1.msra.mxu0 %v561
    %767 = vmatprep.subr.mxu0 %v564
    %768 = vmatpush1.msra.mxu0 %v563
    %769 = vmatprep.subr.mxu0 %v566
    %770 = vmatpush1.msra.mxu0 %v565
    %771 = vmatprep.subr.mxu0 %v568
    %772 = vmatpush1.msra.mxu0 %v567
    %773 = vmatprep.subr.mxu0 %v570
    %774 = vmatpush1.msra.mxu0 %v569
    %775 = vmatprep.subr.mxu0 %v572
    %776 = vmatpush1.msra.mxu0 %v571
    %777 = vmatprep.subr.mxu0 %v574
    %778 = vmatpush1.msra.mxu0 %v573
    %779 = vmatprep.subr.mxu0 %v576
    %780 = vmatpush1.msra.mxu0 %v575
    %781 = vmatprep.subr.mxu0 %v578
    %782 = vmatpush1.msra.mxu0 %v577
    %783 = vmatprep.subr.mxu0 %v580
    %784 = vmatpush1.msra.mxu0 %v579
    %785 = vmatprep.subr.mxu0 %v582
    %786 = vmatpush1.msra.mxu0 %v581
    %787 = vmatprep.subr.mxu0 %v584
    %788 = vmatpush1.msra.mxu0 %v583
    %789 = vmatprep.subr.mxu0 %v586
    %790 = vmatpush1.msra.mxu0 %v585
    %791 = vmatprep.mubr.f32.mxu0 %v512
    %792 = vmatmul.mubr.f32.gmra.mrb[0].mxu0 %v511
    %v793 = vpop.f32.mrb[0].mxu0
    %v794 = vadd.f32 %v720, %v793
    %v795 = vpop.f32.mrb[0].mxu0
    %v796 = vadd.f32 %v724, %v795
    %797 = vmatprep.mubr.f32.mxu0 %v518
    %798 = vmatmul.mubr.f32.gmra.mrb[0].mxu0 %v517
    %v799 = vpop.f32.mrb[0].mxu0
    %v800 = vadd.f32 %v720, %v799
    %v801 = vpop.f32.mrb[0].mxu0
    %v802 = vadd.f32 %v724, %v801
    %803 = vdwg.mxu0
    %804 = vmatprep.subr.mxu0 %v588
    %805 = vmatpush1.msra.mxu0 %v587
    %806 = vmatprep.subr.mxu0 %v590
    %807 = vmatpush1.msra.mxu0 %v589
    %808 = vmatprep.subr.mxu0 %v592
    %809 = vmatpush1.msra.mxu0 %v591
    %810 = vmatprep.subr.mxu0 %v594
    %811 = vmatpush1.msra.mxu0 %v593
    %812 = vmatprep.subr.mxu0 %v596
    %813 = vmatpush1.msra.mxu0 %v595
    %814 = vmatprep.subr.mxu0 %v598
    %815 = vmatpush1.msra.mxu0 %v597
    %816 = vmatprep.subr.mxu0 %v600
    %817 = vmatpush1.msra.mxu0 %v599
    %818 = vmatprep.subr.mxu0 %v602
    %819 = vmatpush1.msra.mxu0 %v601
    %820 = vmatprep.subr.mxu0 %v604
    %821 = vmatpush1.msra.mxu0 %v603
    %822 = vmatprep.subr.mxu0 %v606
    %823 = vmatpush1.msra.mxu0 %v605
    %824 = vmatprep.subr.mxu0 %v608
    %825 = vmatpush1.msra.mxu0 %v607
    %826 = vmatprep.subr.mxu0 %v610
    %827 = vmatpush1.msra.mxu0 %v609
    %828 = vmatprep.subr.mxu0 %v612
    %829 = vmatpush1.msra.mxu0 %v611
    %830 = vmatprep.subr.mxu0 %v614
    %831 = vmatpush1.msra.mxu0 %v613
    %832 = vmatprep.subr.mxu0 %v616
    %833 = vmatpush1.msra.mxu0 %v615
    %834 = vmatprep.subr.mxu0 %v618
    %835 = vmatpush1.msra.mxu0 %v617
    %836 = vmatprep.subr.mxu0 %v620
    %837 = vmatpush1.msra.mxu0 %v619
    %838 = vmatprep.subr.mxu0 %v622
    %839 = vmatpush1.msra.mxu0 %v621
    %840 = vmatprep.subr.mxu0 %v624
    %841 = vmatpush1.msra.mxu0 %v623
    %842 = vmatprep.subr.mxu0 %v626
    %843 = vmatpush1.msra.mxu0 %v625
    %844 = vmatprep.subr.mxu0 %v628
    %845 = vmatpush1.msra.mxu0 %v627
    %846 = vmatprep.subr.mxu0 %v630
    %847 = vmatpush1.msra.mxu0 %v629
    %848 = vmatprep.subr.mxu0 %v632
    %849 = vmatpush1.msra.mxu0 %v631
    %850 = vmatprep.subr.mxu0 %v634
    %851 = vmatpush1.msra.mxu0 %v633
    %852 = vmatprep.subr.mxu0 %v636
    %853 = vmatpush1.msra.mxu0 %v635
    %854 = vmatprep.subr.mxu0 %v638
    %855 = vmatpush1.msra.mxu0 %v637
    %856 = vmatprep.subr.mxu0 %v640
    %857 = vmatpush1.msra.mxu0 %v639
    %858 = vmatprep.subr.mxu0 %v642
    %859 = vmatpush1.msra.mxu0 %v641
    %860 = vmatprep.subr.mxu0 %v644
    %861 = vmatpush1.msra.mxu0 %v643
    %862 = vmatprep.subr.mxu0 %v646
    %863 = vmatpush1.msra.mxu0 %v645
    %864 = vmatprep.subr.mxu0 %v648
    %865 = vmatpush1.msra.mxu0 %v647
    %866 = vmatprep.subr.mxu0 %v650
    %867 = vmatpush1.msra.mxu0 %v649
    %868 = vmatprep.mubr.f32.mxu0 %v514
    %869 = vmatmul.mubr.f32.gmra.mrb[0].mxu0 %v513
    %v870 = vpop.f32.mrb[0].mxu0
    %v871 = vadd.f32 %v794, %v870
    %v872 = vpop.f32.mrb[0].mxu0
    %v873 = vadd.f32 %v796, %v872
    %874 = vmatprep.mubr.f32.mxu0 %v520
    %875 = vmatmul.mubr.f32.gmra.mrb[0].mxu0 %v519
    %v876 = vpop.f32.mrb[0].mxu0
    %v877 = vadd.f32 %v800, %v876
    %v878 = vpop.f32.mrb[0].mxu0
    %v879 = vadd.f32 %v802, %v878
    %880 = vdwg.mxu0
    %881 = vmatprep.subr.mxu0 %v652
    %882 = vmatpush1.msra.mxu0 %v651
    %883 = vmatprep.subr.mxu0 %v654
    %884 = vmatpush1.msra.mxu0 %v653
    %885 = vmatprep.subr.mxu0 %v656
    %886 = vmatpush1.msra.mxu0 %v655
    %887 = vmatprep.subr.mxu0 %v658
    %888 = vmatpush1.msra.mxu0 %v657
    %889 = vmatprep.subr.mxu0 %v660
    %890 = vmatpush1.msra.mxu0 %v659
    %891 = vmatprep.subr.mxu0 %v662
    %892 = vmatpush1.msra.mxu0 %v661
    %893 = vmatprep.subr.mxu0 %v664
    %894 = vmatpush1.msra.mxu0 %v663
    %895 = vmatprep.subr.mxu0 %v666
    %896 = vmatpush1.msra.mxu0 %v665
    %897 = vmatprep.subr.mxu0 %v668
    %898 = vmatpush1.msra.mxu0 %v667
    %899 = vmatprep.subr.mxu0 %v670
    %900 = vmatpush1.msra.mxu0 %v669
    %901 = vmatprep.subr.mxu0 %v672
    %902 = vmatpush1.msra.mxu0 %v671
    %903 = vmatprep.subr.mxu0 %v674
    %904 = vmatpush1.msra.mxu0 %v673
    %905 = vmatprep.subr.mxu0 %v676
    %906 = vmatpush1.msra.mxu0 %v675
    %907 = vmatprep.subr.mxu0 %v678
    %908 = vmatpush1.msra.mxu0 %v677
    %909 = vmatprep.subr.mxu0 %v680
    %910 = vmatpush1.msra.mxu0 %v679
    %911 = vmatprep.subr.mxu0 %v682
    %912 = vmatpush1.msra.mxu0 %v681
    %913 = vmatprep.subr.mxu0 %v684
    %914 = vmatpush1.msra.mxu0 %v683
    %915 = vmatprep.subr.mxu0 %v686
    %916 = vmatpush1.msra.mxu0 %v685
    %917 = vmatprep.subr.mxu0 %v688
    %918 = vmatpush1.msra.mxu0 %v687
    %919 = vmatprep.subr.mxu0 %v690
    %920 = vmatpush1.msra.mxu0 %v689
    %921 = vmatprep.subr.mxu0 %v692
    %922 = vmatpush1.msra.mxu0 %v691
    %923 = vmatprep.subr.mxu0 %v694
    %924 = vmatpush1.msra.mxu0 %v693
    %925 = vmatprep.subr.mxu0 %v696
    %926 = vmatpush1.msra.mxu0 %v695
    %927 = vmatprep.subr.mxu0 %v698
    %928 = vmatpush1.msra.mxu0 %v697
    %929 = vmatprep.subr.mxu0 %v700
    %930 = vmatpush1.msra.mxu0 %v699
    %931 = vmatprep.subr.mxu0 %v702
    %932 = vmatpush1.msra.mxu0 %v701
    %933 = vmatprep.subr.mxu0 %v704
    %934 = vmatpush1.msra.mxu0 %v703
    %935 = vmatprep.subr.mxu0 %v706
    %936 = vmatpush1.msra.mxu0 %v705
    %937 = vmatprep.subr.mxu0 %v708
    %938 = vmatpush1.msra.mxu0 %v707
    %939 = vmatprep.subr.mxu0 %v710
    %940 = vmatpush1.msra.mxu0 %v709
    %941 = vmatprep.subr.mxu0 %v712
    %942 = vmatpush1.msra.mxu0 %v711
    %943 = vmatprep.subr.mxu0 %v714
    %944 = vmatpush1.msra.mxu0 %v713
    %945 = vmatprep.mubr.f32.mxu0 %v516
    %946 = vmatmul.mubr.f32.gmra.mrb[0].mxu0 %v515
    %v947 = vpop.f32.mrb[0].mxu0
    %v948 = vadd.f32 %v871, %v947
    %v949 = vpop.f32.mrb[0].mxu0
    %v950 = vadd.f32 %v873, %v949
    %951 = vmatprep.mubr.f32.mxu0 %v522
    %952 = vmatmul.mubr.f32.gmra.mrb[0].mxu0 %v521
    %v953 = vpop.f32.mrb[0].mxu0
    %v954 = vadd.f32 %v877, %v953
    %v955 = vpop.f32.mrb[0].mxu0
    %v956 = vadd.f32 %v879, %v955
    %957 = vdwg.mxu0
    %v958 = vmul.f32 %v948, 0.5
    %v959 = vmul.f32 %v950, 0.5
    %v960 = vmul.f32 %v954, 0.5
    %v961 = vmul.f32 %v956, 0.5
    %v962 = vmul.f32 %v948, 0.70710677
    %v963 = vmul.f32 %v950, 0.70710677
    %v964 = vmul.f32 %v954, 0.70710677
    %v965 = vmul.f32 %v956, 0.70710677
    %v966 = verf.f32.pop %v962
    %v967 = verf.f32.pop %v963
    %v968 = verf.f32.pop %v964
    %v969 = verf.f32.pop %v965
    %v970 = vadd.f32 %v966, 1.0
    %v971 = vadd.f32 %v967, 1.0
    %v972 = vadd.f32 %v968, 1.0
    %v973 = vadd.f32 %v969, 1.0
    %v974 = vmul.f32 %v958, %v970
    %v975 = vmul.f32 %v959, %v971
    %v976 = vmul.f32 %v960, %v972
    %v977 = vmul.f32 %v961, %v973
    %978 = vst [vmem:[#allocation3] sm:$0xff] %v974
    %979 = vst.msk [vmem:[#allocation3 + $0x8] sm:$0xff] %vm201, %v975
    %980 = vst [vmem:[#allocation3 + $0x10] sm:$0xff] %v976
    %981 = vst.msk [vmem:[#allocation3 + $0x18] sm:$0xff] %vm201, %v977
    // Predicated region
    $region22: #{mlp_forward.1} parent=1 // pred_check
      _
    $region23: #{mlp_forward.1} parent=1 // pred_check_branch
      %983 = sbr.rel (0) target = $region25
    $region24: #{mlp_forward.1} parent=1 // pred_region
      %s985 = ssub.s32 512, 512
      %986 = vsyncadd [#allocation4], %s985
      %s987 = sshll.u32 [#allocation3], 4
      %s988 = int_to_ptr.vmem [resolvable:$true] %s987
      %993 = dma.vmem_to_hbm [thread:$0]  %s988, 512, %s5, [#allocation4], 256, 256, 16
    $region25: #{mlp_forward.1} parent=1 // pred_fallthru
      _
    // Predicated region
    $region26: #{mlp_forward.1} parent=1 // pred_check
      _
    $region27: #{mlp_forward.1} parent=1 // pred_check_branch
      %995 = sbr.rel (0) target = $region29
    $region28: #{mlp_forward.1} parent=1 // pred_region
      %996 = dma.done [#allocation4], 512
    $region29: #{mlp_forward.1} parent=1 // pred_fallthru
      _
    %997 = vsyncpa [#allocation4], 1

</llo_original>
